<compile_context>
chip_gen: v5e
topology: v5e:2x2
jax: 0.10.0
libtpu: 0.0.40
codegen_flags: <defaults>
</compile_context>

<pallas_src>
import jax
import jax.numpy as jnp
from jax.experimental import pallas as pl
from jax.experimental.pallas import tpu as pltpu


# ------------------------------------------------------------------------------------
# Kernel
# ------------------------------------------------------------------------------------
def zp_critic_kernel(x_ref, w0_ref, b0_ref, w1_ref, b1_ref, w2_ref, b2_ref, o_ref):
    # Layer 1 (arg_net + cond_net fused via block-diagonal weight):
    #   [arg | cond] = ReLU([zk|zi|ai] @ W0 + [b_arg|b_cond])
    h0 = jnp.dot(x_ref[...], w0_ref[...], preferred_element_type=jnp.float32)
    h0 = jnp.maximum(h0 + b0_ref[...], 0.0)                               # (tile, 2H) f32

    # Layer 2: ReLU([arg|cond] @ W1 + b1) -- the arg/cond concat IS layer 1's output.
    h1 = jnp.dot(h0.astype(w1_ref.dtype), w1_ref[...],
                 preferred_element_type=jnp.float32)
    h1 = jnp.maximum(h1 + b1_ref[...], 0.0)                               # (tile, H) f32

    # Layer 3: Linear(H, 1) computed as (1,H) @ (tile,H)^T so the result is a
    # lane-dense (1, tile) row (dense stores instead of 1-lane masked stores).
    out_row = jax.lax.dot_general(
        w2_ref[...], h1,
        dimension_numbers=(((1,), (1,)), ((), ())),
        preferred_element_type=jnp.float32)                               # (1, tile)
    o_ref[...] = (out_row + b2_ref[...]).astype(o_ref.dtype)


# ------------------------------------------------------------------------------------
# Wrapper
# ------------------------------------------------------------------------------------
def _round_up(n, m):
    return ((n + m - 1) // m) * m


def zp_wasserstein_critic_forward(zk, zi, ai, params, *, max_batch_tile=4096):
    """zk: (B, z_dim), zi: (B, z_dim), ai: (B, a_dim). Returns (B, 1) float32."""
    B = zk.shape[0]
    w0, b0, w1, b1 = params["w0"], params["b0"], params["w1"], params["b1"]
    w2_row, b2 = params["w2_row"], params["b2"]
    d_in, two_h = w0.shape
    hidden = w1.shape[1]
    compute_dtype = w0.dtype

    # One packed activation stream: a single wide DMA per grid step instead of 3 narrow ones.
    x = jnp.concatenate([zk, zi, ai], axis=-1).astype(compute_dtype)

    # Batch tile: as large as the cap allows, a multiple of 128 (lane-dense output block),
    # with >= 2 grid steps so both v7x TensorCores get work; pad B rather than shrink the tile.
    num_tiles = max(2, pl.cdiv(B, max_batch_tile))
    tile = _round_up(pl.cdiv(B, num_tiles), 128)
    b_pad = num_tiles * tile
    if b_pad != B:
        x = jnp.pad(x, ((0, b_pad - B), (0, 0)))

    resident = lambda shape: pl.BlockSpec(shape, lambda i: (0, 0))

    out = pl.pallas_call(
        zp_critic_kernel,
        out_shape=jax.ShapeDtypeStruct((1, b_pad), jnp.float32),
        grid_spec=pltpu.PrefetchScalarGridSpec(
            num_scalar_prefetch=0,
            grid=(num_tiles,),
            in_specs=[
                pl.BlockSpec((tile, d_in), lambda i: (i, 0)),       # streamed activations
                resident((d_in, two_h)), resident((1, two_h)),      # W0 (block-diag), b0
                resident((two_h, hidden)), resident((1, hidden)),   # W1, b1
                resident((1, hidden)), resident((1, 1)),            # w2 row, b2
            ],
            out_specs=pl.BlockSpec((1, tile), lambda i: (0, i)),    # lane-dense output row
        ),
        compiler_params=pltpu.CompilerParams(
            dimension_semantics=("parallel",)),
    )(x, w0, b0, w1, b1, w2_row, b2)

    # (1, B_pad) row-major == (B_pad, 1); slice off padded rows.
    return out.reshape(b_pad, 1)[:B]


# ------------------------------------------------------------------------------------
# Parameters (spectral norm applied as pure-JAX weight preprocessing)
# ------------------------------------------------------------------------------------
def _spectral_normalize(w, key, n_iters=30, eps=1e-12):
    """Divide w (shape (in, out)) by its largest singular value via power iteration."""
    out_dim = w.shape[1]
    v = jax.random.normal(key, (out_dim,), jnp.float32)
    v = v / (jnp.linalg.norm(v) + eps)
    u = w @ v
    u = u / (jnp.linalg.norm(u) + eps)
    for _ in range(n_iters):
        v = w.T @ u
        v = v / (jnp.linalg.norm(v) + eps)
        u = w @ v
        u = u / (jnp.linalg.norm(u) + eps)
    sigma = u @ (w @ v)
    return w / (sigma + eps)
    # TODO(synk): torch's spectral_norm updates u/v once per forward during training;
    # here it is applied once at init (equivalent for frozen-weight inference).


def init_params(key, z_dim, a_dim, hidden, compute_dtype=jnp.float32):
    ks = jax.random.split(key, 11)
    # Weights stored (in_features, out_features): kernel computes x @ W + b.
    w_arg = _spectral_normalize(
        jax.random.normal(ks[0], (z_dim, hidden), jnp.float32) * 0.2, ks[1])
    w_cond = jax.random.normal(ks[2], (z_dim + a_dim, hidden), jnp.float32) * 0.2
    w1 = _spectral_normalize(
        jax.random.normal(ks[3], (2 * hidden, hidden), jnp.float32) * 0.2, ks[4])
    w2_col = _spectral_normalize(
        jax.random.normal(ks[5], (hidden, 1), jnp.float32) * 0.2, ks[6])

    b_arg = jax.random.normal(ks[7], (1, hidden), jnp.float32) * 0.01
    b_cond = jax.random.normal(ks[8], (1, hidden), jnp.float32) * 0.01
    b1 = jax.random.normal(ks[9], (1, hidden), jnp.float32) * 0.01
    b2 = jax.random.normal(ks[10], (1, 1), jnp.float32) * 0.01

    # Block-diagonal fused first-layer weight: [zk|zi|ai] @ W0 = [arg_pre | cond_pre].
    d_in = 2 * z_dim + a_dim
    w0 = jnp.zeros((d_in, 2 * hidden), jnp.float32)
    w0 = w0.at[:z_dim, :hidden].set(w_arg)
    w0 = w0.at[z_dim:, hidden:].set(w_cond)
    b0 = jnp.concatenate([b_arg, b_cond], axis=-1)

    return {
        # --- kernel (packed) weights; big matrices optionally bf16, biases stay f32 ---
        "w0": w0.astype(compute_dtype),
        "b0": b0,
        "w1": w1.astype(compute_dtype),
        "b1": b1,
        "w2_row": w2_col.T,          # (1, H) f32
        "b2": b2,                    # (1, 1) f32
        # --- unpacked f32 weights for the pure-JAX reference ---
        "w_arg": w_arg, "b_arg": b_arg,
        "w_cond": w_cond, "b_cond": b_cond,
        "w1_full": w1, "w2_col": w2_col,
    }


# ------------------------------------------------------------------------------------
# Pure-JAX reference (unsplit weights + explicit concats, like the torch code)
# ------------------------------------------------------------------------------------
def zp_wasserstein_critic_ref(zk, zi, ai, p):
    hi = jax.lax.Precision.HIGHEST
    arg = jnp.maximum(jnp.dot(zk, p["w_arg"], precision=hi) + p["b_arg"], 0.0)
    cond = jnp.maximum(
        jnp.dot(jnp.concatenate([zi, ai], -1), p["w_cond"], precision=hi) + p["b_cond"], 0.0)
    h = jnp.maximum(
        jnp.dot(jnp.concatenate([arg, cond], -1), p["w1_full"], precision=hi) + p["b1"], 0.0)
    return jnp.dot(h, p["w2_col"], precision=hi) + p["b2"]


if __name__ == "__main__":
    B, z_dim, a_dim, hidden = 16, 24, 8, 32

    key = jax.random.PRNGKey(0)
    kzk, kzi, kai, kp = jax.random.split(key, 4)
    zk = jax.random.normal(kzk, (B, z_dim), jnp.float32)
    zi = jax.random.normal(kzi, (B, z_dim), jnp.float32)
    ai = jax.random.normal(kai, (B, a_dim), jnp.float32)

    # f32 storage path: tight check against the pure-JAX reference.
    params = init_params(kp, z_dim, a_dim, hidden, compute_dtype=jnp.float32)
    out = jax.block_until_ready(zp_wasserstein_critic_forward(zk, zi, ai, params))
    ref = zp_wasserstein_critic_ref(zk, zi, ai, params)
    assert out.shape == (B, 1)
    assert jnp.allclose(out, ref, atol=1e-4, rtol=1e-4), (out, ref)

    # bf16 storage path (halves HBM traffic on the activation stream at large B); loose check.
    params_bf16 = init_params(kp, z_dim, a_dim, hidden, compute_dtype=jnp.bfloat16)
    out_bf16 = jax.block_until_ready(
        zp_wasserstein_critic_forward(zk, zi, ai, params_bf16))
    assert out_bf16.shape == (B, 1)
    assert jnp.allclose(out_bf16, ref, atol=0.1, rtol=0.1), (out_bf16, ref)

    print("KERNEL_OK")
</pallas_src>

<mosaic_0001>
module attributes {stable_mosaic.version = 11 : i64} {
  func.func @zp_critic_kernel(%arg0: i32, %arg1: memref<128x56xf32, #tpu.memory_space<vmem>>, %arg2: memref<56x64xf32, #tpu.memory_space<vmem>>, %arg3: memref<1x64xf32, #tpu.memory_space<vmem>>, %arg4: memref<64x32xf32, #tpu.memory_space<vmem>>, %arg5: memref<1x32xf32, #tpu.memory_space<vmem>>, %arg6: memref<1x32xf32, #tpu.memory_space<vmem>>, %arg7: memref<1x1xf32, #tpu.memory_space<vmem>>, %arg8: memref<1x128xf32, #tpu.memory_space<vmem>>) attributes {dimension_semantics = [#tpu.dimension_semantics<parallel>], iteration_bounds = array<i64: 2>, scalar_prefetch = 0 : i64, scratch_operands = 0 : i64, tpu.core_type = #tpu.core_type<tc>, window_params = [{transform_indices = @transform_0, window_bounds = array<i64: 128, 56>}, {pipeline_mode = #tpu.pipeline_mode<synchronous>, transform_indices = @transform_1, window_bounds = array<i64: 56, 64>}, {pipeline_mode = #tpu.pipeline_mode<synchronous>, transform_indices = @transform_2, window_bounds = array<i64: 1, 64>}, {pipeline_mode = #tpu.pipeline_mode<synchronous>, transform_indices = @transform_3, window_bounds = array<i64: 64, 32>}, {pipeline_mode = #tpu.pipeline_mode<synchronous>, transform_indices = @transform_4, window_bounds = array<i64: 1, 32>}, {pipeline_mode = #tpu.pipeline_mode<synchronous>, transform_indices = @transform_5, window_bounds = array<i64: 1, 32>}, {pipeline_mode = #tpu.pipeline_mode<synchronous>, transform_indices = @transform_6, window_bounds = array<i64: 1, 1>}, {transform_indices = @transform_7, window_bounds = array<i64: 1, 128>}]} {
    %c0 = arith.constant 0 : index
    %c0_0 = arith.constant 0 : index
    %0 = vector.load %arg1[%c0, %c0_0] : memref<128x56xf32, #tpu.memory_space<vmem>>, vector<128x56xf32>
    %c0_1 = arith.constant 0 : index
    %c0_2 = arith.constant 0 : index
    %1 = vector.load %arg2[%c0_1, %c0_2] : memref<56x64xf32, #tpu.memory_space<vmem>>, vector<56x64xf32>
    %cst = arith.constant dense<0.000000e+00> : vector<128x64xf32>
    %2 = tpu.matmul %0, %1, %cst {dimension_numbers = #tpu.dot_dimension_numbers<[1], [0], [0], [1], [0, 0, 1, 1], [], []>} : vector<128x56xf32>, vector<56x64xf32>, vector<128x64xf32> -> vector<128x64xf32>
    %c0_3 = arith.constant 0 : index
    %c0_4 = arith.constant 0 : index
    %3 = vector.load %arg3[%c0_3, %c0_4] : memref<1x64xf32, #tpu.memory_space<vmem>>, vector<1x64xf32>
    %4 = vector.broadcast %3 : vector<1x64xf32> to vector<128x64xf32>
    %5 = arith.addf %2, %4 : vector<128x64xf32>
    %cst_5 = arith.constant 0.000000e+00 : f32
    %6 = vector.broadcast %cst_5 : f32 to vector<128x64xf32>
    %7 = arith.maximumf %5, %6 : vector<128x64xf32>
    %c0_6 = arith.constant 0 : index
    %c0_7 = arith.constant 0 : index
    %8 = vector.load %arg4[%c0_6, %c0_7] : memref<64x32xf32, #tpu.memory_space<vmem>>, vector<64x32xf32>
    %cst_8 = arith.constant dense<0.000000e+00> : vector<128x32xf32>
    %9 = tpu.matmul %7, %8, %cst_8 {dimension_numbers = #tpu.dot_dimension_numbers<[1], [0], [0], [1], [0, 0, 1, 1], [], []>} : vector<128x64xf32>, vector<64x32xf32>, vector<128x32xf32> -> vector<128x32xf32>
    %c0_9 = arith.constant 0 : index
    %c0_10 = arith.constant 0 : index
    %10 = vector.load %arg5[%c0_9, %c0_10] : memref<1x32xf32, #tpu.memory_space<vmem>>, vector<1x32xf32>
    %11 = vector.broadcast %10 : vector<1x32xf32> to vector<128x32xf32>
    %12 = arith.addf %9, %11 : vector<128x32xf32>
    %cst_11 = arith.constant 0.000000e+00 : f32
    %13 = vector.broadcast %cst_11 : f32 to vector<128x32xf32>
    %14 = arith.maximumf %12, %13 : vector<128x32xf32>
    %c0_12 = arith.constant 0 : index
    %c0_13 = arith.constant 0 : index
    %15 = vector.load %arg6[%c0_12, %c0_13] : memref<1x32xf32, #tpu.memory_space<vmem>>, vector<1x32xf32>
    %cst_14 = arith.constant dense<0.000000e+00> : vector<1x128xf32>
    %16 = tpu.matmul %15, %14, %cst_14 {dimension_numbers = #tpu.dot_dimension_numbers<[1], [1], [0], [0], [0, 0, 1, 0], [], []>} : vector<1x32xf32>, vector<128x32xf32>, vector<1x128xf32> -> vector<1x128xf32>
    %c0_15 = arith.constant 0 : index
    %c0_16 = arith.constant 0 : index
    %17 = vector.load %arg7[%c0_15, %c0_16] : memref<1x1xf32, #tpu.memory_space<vmem>>, vector<1x1xf32>
    %18 = vector.broadcast %17 : vector<1x1xf32> to vector<1x128xf32>
    %19 = arith.addf %16, %18 : vector<1x128xf32>
    %c0_17 = arith.constant 0 : index
    %c0_18 = arith.constant 0 : index
    %20 = vector.load %arg8[%c0_17, %c0_18] : memref<1x128xf32, #tpu.memory_space<vmem>>, vector<1x128xf32>
    tpu.vector_store %arg8[%c0_17, %c0_18], %19 {strides = array<i32>} : memref<1x128xf32, #tpu.memory_space<vmem>>, vector<1x128xf32>,
    return
  }
  func.func @transform_0(%arg0: i32) -> (i32, i32) {
    %c0_i32 = arith.constant 0 : i32
    %c0_i32_0 = arith.constant 0 : i32
    return %arg0, %c0_i32 : i32, i32
  }
  func.func @transform_1(%arg0: i32) -> (i32, i32) {
    %c0_i32 = arith.constant 0 : i32
    %c0_i32_0 = arith.constant 0 : i32
    %c0_i32_1 = arith.constant 0 : i32
    return %c0_i32, %c0_i32_0 : i32, i32
  }
  func.func @transform_2(%arg0: i32) -> (i32, i32) {
    %c0_i32 = arith.constant 0 : i32
    %c0_i32_0 = arith.constant 0 : i32
    %c0_i32_1 = arith.constant 0 : i32
    return %c0_i32, %c0_i32_0 : i32, i32
  }
  func.func @transform_3(%arg0: i32) -> (i32, i32) {
    %c0_i32 = arith.constant 0 : i32
    %c0_i32_0 = arith.constant 0 : i32
    %c0_i32_1 = arith.constant 0 : i32
    return %c0_i32, %c0_i32_0 : i32, i32
  }
  func.func @transform_4(%arg0: i32) -> (i32, i32) {
    %c0_i32 = arith.constant 0 : i32
    %c0_i32_0 = arith.constant 0 : i32
    %c0_i32_1 = arith.constant 0 : i32
    return %c0_i32, %c0_i32_0 : i32, i32
  }
  func.func @transform_5(%arg0: i32) -> (i32, i32) {
    %c0_i32 = arith.constant 0 : i32
    %c0_i32_0 = arith.constant 0 : i32
    %c0_i32_1 = arith.constant 0 : i32
    return %c0_i32, %c0_i32_0 : i32, i32
  }
  func.func @transform_6(%arg0: i32) -> (i32, i32) {
    %c0_i32 = arith.constant 0 : i32
    %c0_i32_0 = arith.constant 0 : i32
    %c0_i32_1 = arith.constant 0 : i32
    return %c0_i32, %c0_i32_0 : i32, i32
  }
  func.func @transform_7(%arg0: i32) -> (i32, i32) {
    %c0_i32 = arith.constant 0 : i32
    %c0_i32_0 = arith.constant 0 : i32
    return %c0_i32, %arg0 : i32, i32
  }
}

</mosaic_0001>

<llo_original>
// kernel: tpu_custom_call.1
$region0: #{tpu_custom_call.1}
  #allocation0 [shape = 'u32[]', space=smem, size = 0x4, offset = 0x4, fixed_abs, tag = 'smem constant byte address 0x4 - core index']
  #allocation1 [shape = 'u32[72,128]{1,0:T(1,128)}', space=vmem, size = 0x9000, scoped, tag = 'internal scratch']
  #allocation2 [shape = 'f32[1,1]{1,0:T(1,128)S(1)}', space=vmem, size = 0x200, scoped, tag = 'scoped memory for tpu_custom_call.1']
  %s0 = inlined_call_operand.vmem [shape: f32[256,56], index: 0, kind: input, shape index: {}]
  %s1 = inlined_call_operand.vmem [shape: f32[56,64], index: 1, kind: input, shape index: {}]
  %s2 = inlined_call_operand.vmem [shape: f32[1,64], index: 2, kind: input, shape index: {}]
  %s3 = inlined_call_operand.vmem [shape: f32[64,32], index: 3, kind: input, shape index: {}]
  %s4 = inlined_call_operand.vmem [shape: f32[1,32], index: 4, kind: input, shape index: {}]
  %s5 = inlined_call_operand.vmem [shape: f32[1,32], index: 5, kind: input, shape index: {}]
  %s6 = inlined_call_operand.<no memory space> [shape: f32[1,1], index: 6, kind: input, shape index: {}]
  %s7 = inlined_call_operand.hbm [shape: f32[1,256], index: 7, kind: output, shape index: {}]
  %s8 = sld [smem:[#allocation0]]
  $region61: #{tpu_custom_call.1} parent=0
    _
  %s10 = ssub.s32 1, %s8
  %s11 = scalar_select 0, %s10, %s8
  %v12 = vstv %s6
  %13 = vst [vmem:[#allocation2] sm:$0x1] %v12
  $region1: #{tpu_custom_call.1} parent=0
    #allocation3 [shape = 'u8[1024]{0}', space=vmem, size = 0x400, scoped, tag = 'output window, operand 0']
    #allocation4 [shape = 's32[2]{0}', space=sflag, size = 0x8, scoped, tag = 'scoped memory for tpu_custom_call.1']
    %14 = vsyncpa [#allocation4], 0
    %s15 = scalar_lea.sflag [#allocation4], 1
    %16 = vsyncpa %s15, 0
    loop: start=0, step=1, limit=4
    $region2: #{tpu_custom_call.1} parent=1 // loop_pre_header
      _
    $region3: #{tpu_custom_call.1} parent=1 // loop_header
      %s18 = sphi 0, %s22
      %p19 = scmp.ge.s32.totalorder %s18, 4
      %s28 = sphi 0, %s30
      %s31 = sphi 0, %s28
      %s32 = sphi 0, %s31
      %s48 = sphi 0, %s32
      %s52 = sphi 0, %s52
      %s54 = sphi 0, %s52
      %s55 = sphi 0, %s54
      %s69 = sphi 0, %s55
      %s73 = sphi 0, %s73
      %s75 = sphi 0, %s73
      %s76 = sphi 0, %s75
      %s90 = sphi 0, %s76
      %s94 = sphi 0, %s94
      %s96 = sphi 0, %s94
      %s97 = sphi 0, %s96
      %s111 = sphi 0, %s97
      %s115 = sphi 0, %s115
      %s117 = sphi 0, %s115
      %s118 = sphi 0, %s117
      %s132 = sphi 0, %s118
      %s136 = sphi 0, %s136
      %s138 = sphi 0, %s136
      %s139 = sphi 0, %s138
      %s153 = sphi 0, %s139
      %s157 = sphi 0, %s157
      %s159 = sphi 0, %s157
      %s160 = sphi 0, %s159
      %s174 = sphi 0, %s160
      %s180 = sphi 0, %s182
      %s183 = sphi 0, %s180
      %s184 = sphi 0, %s183
      %s200 = sphi 0, %s184
    $region4: #{tpu_custom_call.1} parent=1 // loop_header_branch
      %21 = sbr.rel (%p19) target = $region8
    $region5: #{tpu_custom_call.1} parent=1 // loop_body
      %s23 = ssub.s32 %s18, 1
      %s24 = ssub.s32 %s18, 2
      %s25 = sadd.s32 %s18, 1
      %s26 = ssub.s32 %s18, %s25
      %p27 = scmp.eq.s32.totalorder %s26, 0
      %s29 = sadd.s32 %s28, 1
      %s30 = scalar_select %p27, %s28, %s29
      %p33 = pneg %p27
      %p34 = scmp.eq.s32.totalorder %s18, 1
      %p35 = por %p33, %p34
      %p36 = scmp.ne.s32.totalorder %s28, %s31
      %p37 = scmp.eq.s32.totalorder %s18, 0
      %p38 = por %p36, %p37
      %p39 = scmp.ne.s32.totalorder %s28, %s31
      %p40 = scmp.eq.s32.totalorder %s23, 1
      %p41 = por %p39, %p40
      %p42 = scmp.ne.s32.totalorder %s31, %s32
      %p43 = scmp.eq.s32.totalorder %s23, 0
      %p44 = por %p42, %p43
      %p45 = scmp.ne.s32.totalorder %s31, %s32
      %p46 = scmp.eq.s32.totalorder %s24, 1
      %p47 = por %p45, %p46
      %p49 = scmp.ne.s32.totalorder %s32, %s48
      %p50 = scmp.eq.s32.totalorder %s24, 0
      %p51 = por %p49, %p50
      %s53 = sadd.s32 %s52, 1
      %p56 = scmp.eq.s32.totalorder %s18, 1
      %p57 = scmp.ne.s32.totalorder %s52, %s54
      %p58 = scmp.eq.s32.totalorder %s18, 0
      %p59 = por %p57, %p58
      %p60 = scmp.ne.s32.totalorder %s52, %s54
      %p61 = scmp.eq.s32.totalorder %s23, 1
      %p62 = por %p60, %p61
      %p63 = scmp.ne.s32.totalorder %s54, %s55
      %p64 = scmp.eq.s32.totalorder %s23, 0
      %p65 = por %p63, %p64
      %p66 = scmp.ne.s32.totalorder %s54, %s55
      %p67 = scmp.eq.s32.totalorder %s24, 1
      %p68 = por %p66, %p67
      %p70 = scmp.ne.s32.totalorder %s55, %s69
      %p71 = scmp.eq.s32.totalorder %s24, 0
      %p72 = por %p70, %p71
      %s74 = sadd.s32 %s73, 1
      %p77 = scmp.eq.s32.totalorder %s18, 1
      %p78 = scmp.ne.s32.totalorder %s73, %s75
      %p79 = scmp.eq.s32.totalorder %s18, 0
      %p80 = por %p78, %p79
      %p81 = scmp.ne.s32.totalorder %s73, %s75
      %p82 = scmp.eq.s32.totalorder %s23, 1
      %p83 = por %p81, %p82
      %p84 = scmp.ne.s32.totalorder %s75, %s76
      %p85 = scmp.eq.s32.totalorder %s23, 0
      %p86 = por %p84, %p85
      %p87 = scmp.ne.s32.totalorder %s75, %s76
      %p88 = scmp.eq.s32.totalorder %s24, 1
      %p89 = por %p87, %p88
      %p91 = scmp.ne.s32.totalorder %s76, %s90
      %p92 = scmp.eq.s32.totalorder %s24, 0
      %p93 = por %p91, %p92
      %s95 = sadd.s32 %s94, 1
      %p98 = scmp.eq.s32.totalorder %s18, 1
      %p99 = scmp.ne.s32.totalorder %s94, %s96
      %p100 = scmp.eq.s32.totalorder %s18, 0
      %p101 = por %p99, %p100
      %p102 = scmp.ne.s32.totalorder %s94, %s96
      %p103 = scmp.eq.s32.totalorder %s23, 1
      %p104 = por %p102, %p103
      %p105 = scmp.ne.s32.totalorder %s96, %s97
      %p106 = scmp.eq.s32.totalorder %s23, 0
      %p107 = por %p105, %p106
      %p108 = scmp.ne.s32.totalorder %s96, %s97
      %p109 = scmp.eq.s32.totalorder %s24, 1
      %p110 = por %p108, %p109
      %p112 = scmp.ne.s32.totalorder %s97, %s111
      %p113 = scmp.eq.s32.totalorder %s24, 0
      %p114 = por %p112, %p113
      %s116 = sadd.s32 %s115, 1
      %p119 = scmp.eq.s32.totalorder %s18, 1
      %p120 = scmp.ne.s32.totalorder %s115, %s117
      %p121 = scmp.eq.s32.totalorder %s18, 0
      %p122 = por %p120, %p121
      %p123 = scmp.ne.s32.totalorder %s115, %s117
      %p124 = scmp.eq.s32.totalorder %s23, 1
      %p125 = por %p123, %p124
      %p126 = scmp.ne.s32.totalorder %s117, %s118
      %p127 = scmp.eq.s32.totalorder %s23, 0
      %p128 = por %p126, %p127
      %p129 = scmp.ne.s32.totalorder %s117, %s118
      %p130 = scmp.eq.s32.totalorder %s24, 1
      %p131 = por %p129, %p130
      %p133 = scmp.ne.s32.totalorder %s118, %s132
      %p134 = scmp.eq.s32.totalorder %s24, 0
      %p135 = por %p133, %p134
      %s137 = sadd.s32 %s136, 1
      %p140 = scmp.eq.s32.totalorder %s18, 1
      %p141 = scmp.ne.s32.totalorder %s136, %s138
      %p142 = scmp.eq.s32.totalorder %s18, 0
      %p143 = por %p141, %p142
      %p144 = scmp.ne.s32.totalorder %s136, %s138
      %p145 = scmp.eq.s32.totalorder %s23, 1
      %p146 = por %p144, %p145
      %p147 = scmp.ne.s32.totalorder %s138, %s139
      %p148 = scmp.eq.s32.totalorder %s23, 0
      %p149 = por %p147, %p148
      %p150 = scmp.ne.s32.totalorder %s138, %s139
      %p151 = scmp.eq.s32.totalorder %s24, 1
      %p152 = por %p150, %p151
      %p154 = scmp.ne.s32.totalorder %s139, %s153
      %p155 = scmp.eq.s32.totalorder %s24, 0
      %p156 = por %p154, %p155
      %s158 = sadd.s32 %s157, 1
      %p161 = scmp.eq.s32.totalorder %s18, 1
      %p162 = scmp.ne.s32.totalorder %s157, %s159
      %p163 = scmp.eq.s32.totalorder %s18, 0
      %p164 = por %p162, %p163
      %p165 = scmp.ne.s32.totalorder %s157, %s159
      %p166 = scmp.eq.s32.totalorder %s23, 1
      %p167 = por %p165, %p166
      %p168 = scmp.ne.s32.totalorder %s159, %s160
      %p169 = scmp.eq.s32.totalorder %s23, 0
      %p170 = por %p168, %p169
      %p171 = scmp.ne.s32.totalorder %s159, %s160
      %p172 = scmp.eq.s32.totalorder %s24, 1
      %p173 = por %p171, %p172
      %p175 = scmp.ne.s32.totalorder %s160, %s174
      %p176 = scmp.eq.s32.totalorder %s24, 0
      %p177 = por %p175, %p176
      %s178 = ssub.s32 %s18, %s25
      %p179 = scmp.eq.s32.totalorder %s178, 0
      %s181 = sadd.s32 %s180, 1
      %s182 = scalar_select %p179, %s180, %s181
      %p185 = pneg %p179
      %p186 = scmp.eq.s32.totalorder %s18, 1
      %p187 = por %p185, %p186
      %p188 = scmp.ne.s32.totalorder %s180, %s183
      %p189 = scmp.eq.s32.totalorder %s18, 0
      %p190 = por %p188, %p189
      %p191 = scmp.ne.s32.totalorder %s180, %s183
      %p192 = scmp.eq.s32.totalorder %s23, 1
      %p193 = por %p191, %p192
      %p194 = scmp.ne.s32.totalorder %s183, %s184
      %p195 = scmp.eq.s32.totalorder %s23, 0
      %p196 = por %p194, %p195
      %p197 = scmp.ne.s32.totalorder %s183, %s184
      %p198 = scmp.eq.s32.totalorder %s24, 1
      %p199 = por %p197, %p198
      %p201 = scmp.ne.s32.totalorder %s184, %s200
      %p202 = scmp.eq.s32.totalorder %s24, 0
      %p203 = por %p201, %p202
      %p204 = scmp.le.s32.totalorder 1, %s18
      %p205 = scmp.lt.s32.totalorder %s18, 3
      %p206 = pnand %p204, %p205
      %p207 = pneg %p206
      // Predicated region
      $region9: #{tpu_custom_call.1} parent=5 // pred_check
        _
      $region10: #{tpu_custom_call.1} parent=5 // pred_check_branch
        %209 = sbr.rel (%p206) target = $region12
      $region11: #{tpu_custom_call.1} parent=5 // pred_region
        %s210 = ssub.s32 %s18, 1
        // Predicated region
        $region13: #{tpu_custom_call.1} parent=11 // pred_check
          %p211 = pneg %p65
        $region14: #{tpu_custom_call.1} parent=11 // pred_check_branch
          %213 = sbr.rel (%p211) target = $region16
        $region15: #{tpu_custom_call.1} parent=11 // pred_region
          _
        $region16: #{tpu_custom_call.1} parent=11 // pred_fallthru
          _
        // Predicated region
        $region17: #{tpu_custom_call.1} parent=11 // pred_check
          %p214 = pneg %p86
        $region18: #{tpu_custom_call.1} parent=11 // pred_check_branch
          %216 = sbr.rel (%p214) target = $region20
        $region19: #{tpu_custom_call.1} parent=11 // pred_region
          _
        $region20: #{tpu_custom_call.1} parent=11 // pred_fallthru
          _
        // Predicated region
        $region21: #{tpu_custom_call.1} parent=11 // pred_check
          %p217 = pneg %p107
        $region22: #{tpu_custom_call.1} parent=11 // pred_check_branch
          %219 = sbr.rel (%p217) target = $region24
        $region23: #{tpu_custom_call.1} parent=11 // pred_region
          _
        $region24: #{tpu_custom_call.1} parent=11 // pred_fallthru
          _
        // Predicated region
        $region25: #{tpu_custom_call.1} parent=11 // pred_check
          %p220 = pneg %p128
        $region26: #{tpu_custom_call.1} parent=11 // pred_check_branch
          %222 = sbr.rel (%p220) target = $region28
        $region27: #{tpu_custom_call.1} parent=11 // pred_region
          _
        $region28: #{tpu_custom_call.1} parent=11 // pred_fallthru
          _
        // Predicated region
        $region29: #{tpu_custom_call.1} parent=11 // pred_check
          %p223 = pneg %p149
        $region30: #{tpu_custom_call.1} parent=11 // pred_check_branch
          %225 = sbr.rel (%p223) target = $region32
        $region31: #{tpu_custom_call.1} parent=11 // pred_region
          _
        $region32: #{tpu_custom_call.1} parent=11 // pred_fallthru
          _
        // Predicated region
        $region33: #{tpu_custom_call.1} parent=11 // pred_check
          %p226 = pneg %p170
        $region34: #{tpu_custom_call.1} parent=11 // pred_check_branch
          %228 = sbr.rel (%p226) target = $region36
        $region35: #{tpu_custom_call.1} parent=11 // pred_region
          _
        $region36: #{tpu_custom_call.1} parent=11 // pred_fallthru
          _
      $region12: #{tpu_custom_call.1} parent=5 // pred_fallthru
        _
      %p229 = scmp.lt.s32.totalorder %s18, 2
      // Predicated region
      $region37: #{tpu_custom_call.1} parent=5 // pred_check
        %p230 = pneg %p229
      $region38: #{tpu_custom_call.1} parent=5 // pred_check_branch
        %232 = sbr.rel (%p230) target = $region40
      $region39: #{tpu_custom_call.1} parent=5 // pred_region
        // Predicated region
        $region41: #{tpu_custom_call.1} parent=39 // pred_check
          %p233 = pneg %p38
        $region42: #{tpu_custom_call.1} parent=39 // pred_check_branch
          %235 = sbr.rel (%p233) target = $region44
        $region43: #{tpu_custom_call.1} parent=39 // pred_region
          %s236 = smul.u32 16, %s18
          %p237 = scmp.lt.s32.totalorder %s236, 31
          %s238 = scalar_select %p237, %s236, 31
          %s239 = smul.addr %s238, 8
          %s240 = scalar_lea.vmem %s0, %s239
          %s241 = smul.u32 16, %s18
        $region44: #{tpu_custom_call.1} parent=39 // pred_fallthru
          _
      $region40: #{tpu_custom_call.1} parent=5 // pred_fallthru
        _
      %p242 = scmp.le.s32.totalorder 1, %s18
      %p243 = scmp.lt.s32.totalorder %s18, 3
      %p244 = pnand %p242, %p243
      %p245 = pneg %p244
      // Predicated region
      $region45: #{tpu_custom_call.1} parent=5 // pred_check
        _
      $region46: #{tpu_custom_call.1} parent=5 // pred_check_branch
        %247 = sbr.rel (%p244) target = $region48
      $region47: #{tpu_custom_call.1} parent=5 // pred_region
        %s248 = ssub.s32 %s18, 1
        %s249 = smul.u32 16, %s23
        %p250 = scmp.lt.s32.totalorder %s249, 31
        %s251 = scalar_select %p250, %s249, 31
        %s252 = smul.addr %s251, 8
        %s253 = scalar_lea.vmem %s0, %s252
        %p254 = pneg %p44
        %p255 = pneg %p41
        %p256 = pneg %p65
        %p257 = pneg %p62
        %p258 = pneg %p86
        %p259 = pneg %p83
        %p260 = pneg %p107
        %p261 = pneg %p104
        %p262 = pneg %p128
        %p263 = pneg %p125
        %p264 = pneg %p149
        %p265 = pneg %p146
        %p266 = pneg %p170
        %p267 = pneg %p167
        %p268 = pneg %p196
        %p269 = pneg %p193
        %s270 = sand.u32 %s183, 1
        %s271 = scalar_lea.sflag [#allocation4], %s270
        %s272 = sand.u32 %s183, 1
        %s273 = scalar_lea.vmem [#allocation3], %s272
        %s274 = smul.u32 16, %s23
        %p275 = scmp.lt.s32.totalorder %s274, 31
        %s276 = scalar_select %p275, %s274, 31
        %s277 = smul.addr %s276, 8
        %s278 = scalar_lea.vmem %s0, %s277
        %s279 = smul.u32 16, %s23
        %v280 = vld [vmem:[%s278] sm:$0xff]
        %v281 = vld [vmem:[%s278 + $0x8] sm:$0xff]
        %v282 = vld [vmem:[%s278 + $0x10] sm:$0xff]
        %v283 = vld [vmem:[%s278 + $0x18] sm:$0xff]
        %v284 = vld [vmem:[%s278 + $0x20] sm:$0xff]
        %v285 = vld [vmem:[%s278 + $0x28] sm:$0xff]
        %v286 = vld [vmem:[%s278 + $0x30] sm:$0xff]
        %v287 = vld [vmem:[%s278 + $0x38] sm:$0xff]
        %v288 = vld [vmem:[%s278 + $0x40] sm:$0xff]
        %v289 = vld [vmem:[%s278 + $0x48] sm:$0xff]
        %v290 = vld [vmem:[%s278 + $0x50] sm:$0xff]
        %v291 = vld [vmem:[%s278 + $0x58] sm:$0xff]
        %v292 = vld [vmem:[%s278 + $0x60] sm:$0xff]
        %v293 = vld [vmem:[%s278 + $0x68] sm:$0xff]
        %v294 = vld [vmem:[%s278 + $0x70] sm:$0xff]
        %v295 = vld [vmem:[%s278 + $0x78] sm:$0xff]
        %v296 = vld [vmem:[%s1] sm:$0xff]
        %v297 = vld [vmem:[%s1 + $0x8] sm:$0xff]
        %v298 = vld [vmem:[%s1 + $0x10] sm:$0xff]
        %v299 = vld [vmem:[%s1 + $0x18] sm:$0xff]
        %v300 = vld [vmem:[%s1 + $0x20] sm:$0xff]
        %v301 = vld [vmem:[%s1 + $0x28] sm:$0xff]
        %v302 = vld [vmem:[%s1 + $0x30] sm:$0xff]
        %v303 = vld [vmem:[%s2] sm:$0x1]
        %v305 = vperm.slane %v303, 0
        %vm307 = vcmask 457728
        %v309 = vsel %vm307, %v280, 0
        %v312 = vsel %vm307, %v281, 0
        %v315 = vsel %vm307, %v282, 0
        %v318 = vsel %vm307, %v283, 0
        %v321 = vsel %vm307, %v284, 0
        %v324 = vsel %vm307, %v285, 0
        %v327 = vsel %vm307, %v286, 0
        %v330 = vsel %vm307, %v287, 0
        %v333 = vsel %vm307, %v288, 0
        %v336 = vsel %vm307, %v289, 0
        %v339 = vsel %vm307, %v290, 0
        %v342 = vsel %vm307, %v291, 0
        %v345 = vsel %vm307, %v292, 0
        %v348 = vsel %vm307, %v293, 0
        %v351 = vsel %vm307, %v294, 0
        %v354 = vsel %vm307, %v295, 0
        %356 = vmatpush.msra.mxu0 0.0
        %357 = vmatpush.msra.mxu0 0.0
        %358 = vmatpush.msra.mxu0 0.0
        %359 = vmatpush.msra.mxu0 0.0
        %360 = vmatpush.msra.mxu0 0.0
        %361 = vmatpush.msra.mxu0 0.0
        %362 = vmatpush.msra.mxu0 0.0
        %363 = vmatpush.msra.mxu0 0.0
        %364 = vmatpush.msra.mxu0 0.0
        %365 = vmatpush.msra.mxu0 %v302
        %366 = vmatpush.msra.mxu0 %v301
        %367 = vmatpush.msra.mxu0 %v300
        %368 = vmatpush.msra.mxu0 %v299
        %369 = vmatpush.msra.mxu0 %v298
        %370 = vmatpush.msra.mxu0 %v297
        %371 = vmatpush.msra.mxu0 %v296
        %372 = vmatmul.f32.gmra.mxu0 %v309
        %v373 = vpop.f32.mrf.mxu0
        %v374 = vadd.f32 %v305, %v373
        %375 = vmatmul.f32.gmra.mxu0 %v312
        %v376 = vpop.f32.mrf.mxu0
        %v377 = vadd.f32 %v305, %v376
        %378 = vmatmul.f32.gmra.mxu0 %v315
        %v379 = vpop.f32.mrf.mxu0
        %v380 = vadd.f32 %v305, %v379
        %381 = vmatmul.f32.gmra.mxu0 %v318
        %v382 = vpop.f32.mrf.mxu0
        %v383 = vadd.f32 %v305, %v382
        %384 = vmatmul.f32.gmra.mxu0 %v321
        %v385 = vpop.f32.mrf.mxu0
        %v386 = vadd.f32 %v305, %v385
        %387 = vmatmul.f32.gmra.mxu0 %v324
        %v388 = vpop.f32.mrf.mxu0
        %v389 = vadd.f32 %v305, %v388
        %390 = vmatmul.f32.gmra.mxu0 %v327
        %v391 = vpop.f32.mrf.mxu0
        %v392 = vadd.f32 %v305, %v391
        %393 = vmatmul.f32.gmra.mxu0 %v330
        %v394 = vpop.f32.mrf.mxu0
        %v395 = vadd.f32 %v305, %v394
        %396 = vmatmul.f32.gmra.mxu0 %v333
        %v397 = vpop.f32.mrf.mxu0
        %v398 = vadd.f32 %v305, %v397
        %399 = vmatmul.f32.gmra.mxu0 %v336
        %v400 = vpop.f32.mrf.mxu0
        %v401 = vadd.f32 %v305, %v400
        %402 = vmatmul.f32.gmra.mxu0 %v339
        %v403 = vpop.f32.mrf.mxu0
        %v404 = vadd.f32 %v305, %v403
        %405 = vmatmul.f32.gmra.mxu0 %v342
        %v406 = vpop.f32.mrf.mxu0
        %v407 = vadd.f32 %v305, %v406
        %408 = vmatmul.f32.gmra.mxu0 %v345
        %v409 = vpop.f32.mrf.mxu0
        %v410 = vadd.f32 %v305, %v409
        %411 = vmatmul.f32.gmra.mxu0 %v348
        %v412 = vpop.f32.mrf.mxu0
        %v413 = vadd.f32 %v305, %v412
        %414 = vmatmul.f32.gmra.mxu0 %v351
        %v415 = vpop.f32.mrf.mxu0
        %v416 = vadd.f32 %v305, %v415
        %417 = vmatmul.f32.gmra.mxu0 %v354
        %v418 = vpop.f32.mrf.mxu0
        %v419 = vadd.f32 %v305, %v418
        %420 = vdwg.mxu0
        %v421 = vmax.f32 %v374, 0.0
        %v422 = vmax.f32 %v377, 0.0
        %v423 = vmax.f32 %v380, 0.0
        %v424 = vmax.f32 %v383, 0.0
        %v425 = vmax.f32 %v386, 0.0
        %v426 = vmax.f32 %v389, 0.0
        %v427 = vmax.f32 %v392, 0.0
        %v428 = vmax.f32 %v395, 0.0
        %v429 = vmax.f32 %v398, 0.0
        %v430 = vmax.f32 %v401, 0.0
        %v431 = vmax.f32 %v404, 0.0
        %v432 = vmax.f32 %v407, 0.0
        %v433 = vmax.f32 %v410, 0.0
        %v434 = vmax.f32 %v413, 0.0
        %v435 = vmax.f32 %v416, 0.0
        %v436 = vmax.f32 %v419, 0.0
        %v437 = vld [vmem:[%s3] sm:$0xff]
        %v438 = vld [vmem:[%s3 + $0x8] sm:$0xff]
        %v439 = vld [vmem:[%s3 + $0x10] sm:$0xff]
        %v440 = vld [vmem:[%s3 + $0x18] sm:$0xff]
        %v441 = vld [vmem:[%s3 + $0x20] sm:$0xff]
        %v442 = vld [vmem:[%s3 + $0x28] sm:$0xff]
        %v443 = vld [vmem:[%s3 + $0x30] sm:$0xff]
        %v444 = vld [vmem:[%s3 + $0x38] sm:$0xff]
        %v445 = vld [vmem:[%s4] sm:$0x1]
        %v447 = vperm.slane %v445, 0
        %vm449 = vcmask 523264
        %v451 = vsel %vm449, %v421, 0
        %v454 = vsel %vm449, %v422, 0
        %v457 = vsel %vm449, %v423, 0
        %v460 = vsel %vm449, %v424, 0
        %v463 = vsel %vm449, %v425, 0
        %v466 = vsel %vm449, %v426, 0
        %v469 = vsel %vm449, %v427, 0
        %v472 = vsel %vm449, %v428, 0
        %v475 = vsel %vm449, %v429, 0
        %v478 = vsel %vm449, %v430, 0
        %v481 = vsel %vm449, %v431, 0
        %v484 = vsel %vm449, %v432, 0
        %v487 = vsel %vm449, %v433, 0
        %v490 = vsel %vm449, %v434, 0
        %v493 = vsel %vm449, %v435, 0
        %v496 = vsel %vm449, %v436, 0
        %498 = vmatpush.msra.mxu0 0.0
        %499 = vmatpush.msra.mxu0 0.0
        %500 = vmatpush.msra.mxu0 0.0
        %501 = vmatpush.msra.mxu0 0.0
        %502 = vmatpush.msra.mxu0 0.0
        %503 = vmatpush.msra.mxu0 0.0
        %504 = vmatpush.msra.mxu0 0.0
        %505 = vmatpush.msra.mxu0 0.0
        %506 = vmatpush.msra.mxu0 %v444
        %507 = vmatpush.msra.mxu0 %v443
        %508 = vmatpush.msra.mxu0 %v442
        %509 = vmatpush.msra.mxu0 %v441
        %510 = vmatpush.msra.mxu0 %v440
        %511 = vmatpush.msra.mxu0 %v439
        %512 = vmatpush.msra.mxu0 %v438
        %513 = vmatpush.msra.mxu0 %v437
        %514 = vmatmul.f32.gmra.mxu0 %v451
        %v515 = vpop.f32.mrf.mxu0
        %v516 = vadd.f32 %v447, %v515
        %517 = vmatmul.f32.gmra.mxu0 %v454
        %v518 = vpop.f32.mrf.mxu0
        %v519 = vadd.f32 %v447, %v518
        %520 = vmatmul.f32.gmra.mxu0 %v457
        %v521 = vpop.f32.mrf.mxu0
        %v522 = vadd.f32 %v447, %v521
        %523 = vmatmul.f32.gmra.mxu0 %v460
        %v524 = vpop.f32.mrf.mxu0
        %v525 = vadd.f32 %v447, %v524
        %526 = vmatmul.f32.gmra.mxu0 %v463
        %v527 = vpop.f32.mrf.mxu0
        %v528 = vadd.f32 %v447, %v527
        %529 = vmatmul.f32.gmra.mxu0 %v466
        %v530 = vpop.f32.mrf.mxu0
        %v531 = vadd.f32 %v447, %v530
        %532 = vmatmul.f32.gmra.mxu0 %v469
        %v533 = vpop.f32.mrf.mxu0
        %v534 = vadd.f32 %v447, %v533
        %535 = vmatmul.f32.gmra.mxu0 %v472
        %v536 = vpop.f32.mrf.mxu0
        %v537 = vadd.f32 %v447, %v536
        %538 = vmatmul.f32.gmra.mxu0 %v475
        %v539 = vpop.f32.mrf.mxu0
        %v540 = vadd.f32 %v447, %v539
        %541 = vmatmul.f32.gmra.mxu0 %v478
        %v542 = vpop.f32.mrf.mxu0
        %v543 = vadd.f32 %v447, %v542
        %544 = vmatmul.f32.gmra.mxu0 %v481
        %v545 = vpop.f32.mrf.mxu0
        %v546 = vadd.f32 %v447, %v545
        %547 = vmatmul.f32.gmra.mxu0 %v484
        %v548 = vpop.f32.mrf.mxu0
        %v549 = vadd.f32 %v447, %v548
        %550 = vmatmul.f32.gmra.mxu0 %v487
        %v551 = vpop.f32.mrf.mxu0
        %v552 = vadd.f32 %v447, %v551
        %553 = vmatmul.f32.gmra.mxu0 %v490
        %v554 = vpop.f32.mrf.mxu0
        %v555 = vadd.f32 %v447, %v554
        %556 = vmatmul.f32.gmra.mxu0 %v493
        %v557 = vpop.f32.mrf.mxu0
        %v558 = vadd.f32 %v447, %v557
        %559 = vmatmul.f32.gmra.mxu0 %v496
        %v560 = vpop.f32.mrf.mxu0
        %v561 = vadd.f32 %v447, %v560
        %562 = vdwg.mxu0
        %v563 = vmax.f32 %v516, 0.0
        %v564 = vmax.f32 %v519, 0.0
        %v565 = vmax.f32 %v522, 0.0
        %v566 = vmax.f32 %v525, 0.0
        %v567 = vmax.f32 %v528, 0.0
        %v568 = vmax.f32 %v531, 0.0
        %v569 = vmax.f32 %v534, 0.0
        %v570 = vmax.f32 %v537, 0.0
        %v571 = vmax.f32 %v540, 0.0
        %v572 = vmax.f32 %v543, 0.0
        %v573 = vmax.f32 %v546, 0.0
        %v574 = vmax.f32 %v549, 0.0
        %v575 = vmax.f32 %v552, 0.0
        %v576 = vmax.f32 %v555, 0.0
        %v577 = vmax.f32 %v558, 0.0
        %v578 = vmax.f32 %v561, 0.0
        %v579 = vld [vmem:[%s5] sm:$0x1]
        %v580 = vld [vmem:[#allocation2] sm:$0x1]
        %582 = vset.pattern.permute.xlu0 0
        %583 = vperm.xlu0 %582, %v580
        %v584 = vpop.permute.xlu0 %583
        %v586 = vperm.slane %v584, 0
        %vm587 = vcmask 261120
        %v589 = vsel %vm587, %v579, 0
        %v592 = vsel %vm587, %v563, 0
        %v595 = vsel %vm587, %v564, 0
        %v598 = vsel %vm587, %v565, 0
        %v601 = vsel %vm587, %v566, 0
        %v604 = vsel %vm587, %v567, 0
        %v607 = vsel %vm587, %v568, 0
        %v610 = vsel %vm587, %v569, 0
        %v613 = vsel %vm587, %v570, 0
        %v616 = vsel %vm587, %v571, 0
        %v619 = vsel %vm587, %v572, 0
        %v622 = vsel %vm587, %v573, 0
        %v625 = vsel %vm587, %v574, 0
        %v628 = vsel %vm587, %v575, 0
        %v631 = vsel %vm587, %v576, 0
        %v634 = vsel %vm587, %v577, 0
        %v637 = vsel %vm587, %v578, 0
        %639 = vmatpush.xpose.msra.mxu0 %v637
        %640 = vmatpush.xpose.msra.mxu0 %v634
        %641 = vmatpush.xpose.msra.mxu0 %v631
        %642 = vmatpush.xpose.msra.mxu0 %v628
        %643 = vmatpush.xpose.msra.mxu0 %v625
        %644 = vmatpush.xpose.msra.mxu0 %v622
        %645 = vmatpush.xpose.msra.mxu0 %v619
        %646 = vmatpush.xpose.msra.mxu0 %v616
        %647 = vmatpush.xpose.msra.mxu0 %v613
        %648 = vmatpush.xpose.msra.mxu0 %v610
        %649 = vmatpush.xpose.msra.mxu0 %v607
        %650 = vmatpush.xpose.msra.mxu0 %v604
        %651 = vmatpush.xpose.msra.mxu0 %v601
        %652 = vmatpush.xpose.msra.mxu0 %v598
        %653 = vmatpush.xpose.msra.mxu0 %v595
        %654 = vmatpush.xpose.msra.mxu0 %v592
        %655 = vmatmul.f32.gmra.mxu0 %v589
        %v656 = vpop.f32.mrf.mxu0
        %v657 = vadd.f32 %v586, %v656
        %658 = vdwg.mxu0
        %659 = vst [vmem:[%s273] sm:$0x1] %v657
        %s660 = sand.u32 %s183, 1
        %s661 = scalar_lea.sflag [#allocation4], %s660
        %s662 = sand.u32 %s183, 1
        %s663 = scalar_lea.vmem [#allocation3], %s662
        // Predicated region
        $region49: #{tpu_custom_call.1} parent=47 // pred_check
          %p664 = pneg %p193
        $region50: #{tpu_custom_call.1} parent=47 // pred_check_branch
          %666 = sbr.rel (%p664) target = $region52
        $region51: #{tpu_custom_call.1} parent=47 // pred_region
          %668 = vsyncadd %s661, 0
          %s669 = scalar_lea.hbm %s7, %s23
          %s671 = sshll.u32 %s663, 4
          %s672 = int_to_ptr.vmem [resolvable:$true] %s671
          %s673 = sshll.u32 %s669, 4
          %s674 = int_to_ptr.hbm [resolvable:$true] %s673
          %676 = dma.vmem_to_hbm [thread:$0]  %s672, 16, %s674, %s661
        $region52: #{tpu_custom_call.1} parent=47 // pred_fallthru
          _
      $region48: #{tpu_custom_call.1} parent=5 // pred_fallthru
        _
      %p677 = scmp.le.s32.totalorder 2, %s18
      // Predicated region
      $region53: #{tpu_custom_call.1} parent=5 // pred_check
        %p678 = pneg %p677
      $region54: #{tpu_custom_call.1} parent=5 // pred_check_branch
        %680 = sbr.rel (%p678) target = $region56
      $region55: #{tpu_custom_call.1} parent=5 // pred_region
        %s681 = ssub.s32 %s18, 2
        // Predicated region
        $region57: #{tpu_custom_call.1} parent=55 // pred_check
          %p682 = pneg %p199
        $region58: #{tpu_custom_call.1} parent=55 // pred_check_branch
          %684 = sbr.rel (%p682) target = $region60
        $region59: #{tpu_custom_call.1} parent=55 // pred_region
          %s685 = sand.u32 %s184, 1
          %s686 = scalar_lea.sflag [#allocation4], %s685
          %s687 = sand.u32 %s184, 1
          %s688 = scalar_lea.vmem [#allocation3], %s687
          %690 = dma.done %s686, 16
        $region60: #{tpu_custom_call.1} parent=55 // pred_fallthru
          _
      $region56: #{tpu_custom_call.1} parent=5 // pred_fallthru
        _
    $region6: #{tpu_custom_call.1} parent=1 // loop_footer
      %s22 = sadd.s32 1, %s18
    $region7: #{tpu_custom_call.1} parent=1 // loop_footer_branch
      %17 = sbr.rel target = $region3
    $region8: #{tpu_custom_call.1} parent=1 // loop_exit
      _
    %691 = vsyncpa [#allocation4], 1
    %s692 = scalar_lea.sflag [#allocation4], 1
    %693 = vsyncpa %s692, 1

</llo_original>
